<compile_context>
chip_gen: v5e
topology: v5e:2x2
jax: 0.10.0
libtpu: 0.0.40
codegen_flags: <defaults>
</compile_context>

<pallas_src>
import functools
import time

import numpy as np
import jax
import jax.numpy as jnp
from jax.experimental import pallas as pl
from jax.experimental.pallas import tpu as pltpu


def _round_up(x, m):
    return ((x + m - 1) // m) * m


# --------------------------------------------------------------------------
# Pallas kernels
# --------------------------------------------------------------------------

def _conv_relu_pool_kernel(p_ref, w_ref, b_ref, o_ref):
    # p_ref: (4, tm, Kp) bf16 im2col patch slabs (one per 2x2 pool position)
    # w_ref: (Kp, Cp) bf16, b_ref: (1, Cp) f32, o_ref: (tm, Cp) f32
    w = w_ref[...]
    acc = jnp.dot(p_ref[0], w, preferred_element_type=jnp.float32)
    for j in range(1, 4):
        acc = jnp.maximum(acc,
                          jnp.dot(p_ref[j], w, preferred_element_type=jnp.float32))
    # bias-add and ReLU commute with the pool max -> apply once after the max
    o_ref[...] = jnp.maximum(acc + b_ref[...], 0.0)


def conv_relu_pool(x_nhwc, w_mat, b_mat, cout, tm=128):
    """3x3 valid conv (stride 1) + ReLU + 2x2 stride-2 max-pool (floor).

    w_mat: pre-packed (Kp, Cp) bf16 (K = 9*Cin padded to 128, Cp = Cout -> 128)
    b_mat: (1, Cp) f32
    """
    n, h, w_dim, cin = x_nhwc.shape
    kp, cp = w_mat.shape
    k = 9 * cin
    ho, wo = h - 2, w_dim - 2
    hp, wp = ho // 2, wo // 2

    # im2col glue (plain JAX inside jit): (N, Ho, Wo, 9*Cin), K ordered (kh,kw,cin)
    # TODO(synk): true in-kernel im2col (from a VMEM tile of the NHWC input)
    # needs sublane-splitting reshapes Mosaic may reject; we take the reviewer's
    # fallback of an M-tiled, parallel grid over the patch matrix instead.
    cols = [x_nhwc[:, kh:kh + ho, kw:kw + wo, :]
            for kh in range(3) for kw in range(3)]
    patches = jnp.concatenate(cols, axis=-1)

    # The 4 positions of each 2x2 pool window (floor-crops odd conv outputs).
    quads = [patches[:, dy:dy + 2 * hp:2, dx:dx + 2 * wp:2, :]
             for dy in range(2) for dx in range(2)]
    m = n * hp * wp
    tm_eff = min(tm, _round_up(m, 8))
    m_pad = _round_up(m, tm_eff)
    p = jnp.stack([q.reshape(m, k) for q in quads], axis=0)            # (4, M, K)
    p = jnp.pad(p, ((0, 0), (0, m_pad - m), (0, kp - k))).astype(jnp.bfloat16)

    out = pl.pallas_call(
        _conv_relu_pool_kernel,
        out_shape=jax.ShapeDtypeStruct((m_pad, cp), jnp.float32),
        grid=(m_pad // tm_eff,),
        in_specs=[pl.BlockSpec((4, tm_eff, kp), lambda i: (0, i, 0)),
                  pl.BlockSpec((kp, cp), lambda i: (0, 0)),
                  pl.BlockSpec((1, cp), lambda i: (0, 0))],
        out_specs=pl.BlockSpec((tm_eff, cp), lambda i: (i, 0)),
        compiler_params=pltpu.CompilerParams(
            dimension_semantics=("parallel",)),
    )(p, w_mat, b_mat)
    return out[:m, :cout].reshape(n, hp, wp, cout)


def _linear_kernel(x_ref, w_ref, b_ref, o_ref, acc_ref, *, relu):
    kk = pl.program_id(0)

    @pl.when(kk == 0)
    def _():
        acc_ref[...] = jnp.zeros_like(acc_ref)

    acc_ref[...] += jnp.dot(x_ref[...], w_ref[...],
                            preferred_element_type=jnp.float32)

    @pl.when(kk == pl.num_programs(0) - 1)
    def _():
        y = acc_ref[...] + b_ref[...]
        if relu:
            y = jnp.maximum(y, 0.0)
        o_ref[...] = y


def linear(x, w, b, tk, k, n, relu=False):
    """y = x @ W + b (optional ReLU), K-tiled Pallas matmul.

    w: pre-transposed / pre-padded (Kp, Np) bf16 (Kp = tk * grid, Np multiple of 128)
    b: (1, Np) f32
    """
    m = x.shape[0]
    kp, npad = w.shape
    xp = jnp.pad(x, ((0, 0), (0, kp - k))).astype(jnp.bfloat16)

    out = pl.pallas_call(
        functools.partial(_linear_kernel, relu=relu),
        out_shape=jax.ShapeDtypeStruct((m, npad), jnp.float32),
        grid=(kp // tk,),
        in_specs=[pl.BlockSpec((m, tk), lambda kk: (0, kk)),
                  pl.BlockSpec((tk, npad), lambda kk: (kk, 0)),
                  pl.BlockSpec((1, npad), lambda kk: (0, 0))],
        out_specs=pl.BlockSpec((m, npad), lambda kk: (0, 0)),
        scratch_shapes=[pltpu.VMEM((m, npad), jnp.float32)],
        compiler_params=pltpu.CompilerParams(
            dimension_semantics=("arbitrary",)),
    )(xp, w, b)
    return out[:, :n]


# --------------------------------------------------------------------------
# Parameters: deterministic synthetic init (nn.Module shapes), then one-time
# packing into TPU-friendly layouts (pre-transposed, lane/K padded, bf16).
# --------------------------------------------------------------------------

def _init_raw_params(key):
    def w_init(kk, shape, fan_in):
        return (jax.random.normal(kk, shape, jnp.float32)
                * jnp.float32(1.0 / np.sqrt(fan_in)))

    ks = jax.random.split(key, 22)
    p = {}
    p["c1_w"] = w_init(ks[0], (50, 1, 3, 3), 1 * 9)
    p["c1_b"] = w_init(ks[1], (50,), 1 * 9)
    p["c2_w"] = w_init(ks[2], (50, 50, 3, 3), 50 * 9)
    p["c2_b"] = w_init(ks[3], (50,), 50 * 9)
    p["c3_w"] = w_init(ks[4], (50, 50, 3, 3), 50 * 9)
    p["c3_b"] = w_init(ks[5], (50,), 50 * 9)
    p["linear1_c1_w"] = w_init(ks[6], (500, 50 * 13 * 13), 50 * 13 * 13)
    p["linear1_c1_b"] = w_init(ks[7], (500,), 50 * 13 * 13)
    p["linear2_c1_w"] = w_init(ks[8], (10, 500), 500)
    p["linear2_c1_b"] = w_init(ks[9], (10,), 500)
    p["linear1_c2_w"] = w_init(ks[10], (500, 50 * 5 * 5), 50 * 5 * 5)
    p["linear1_c2_b"] = w_init(ks[11], (500,), 50 * 5 * 5)
    p["linear2_c2_w"] = w_init(ks[12], (10, 500), 500)
    p["linear2_c2_b"] = w_init(ks[13], (10,), 500)
    p["linear1_w"] = w_init(ks[14], (500, 50), 50)
    p["linear1_b"] = w_init(ks[15], (500,), 50)
    p["linear2_w"] = w_init(ks[16], (10, 500), 500)
    p["linear2_b"] = w_init(ks[17], (10,), 500)
    p["decide1_w"] = w_init(ks[18], (2, 50 * 13 * 13), 50 * 13 * 13)
    p["decide1_b"] = w_init(ks[19], (2,), 50 * 13 * 13)
    p["decide2_w"] = w_init(ks[20], (2, 50 * 5 * 5), 50 * 5 * 5)
    p["decide2_b"] = w_init(ks[21], (2,), 50 * 5 * 5)
    return p


def _prep_conv(w_oihw, b):
    cout, cin = int(w_oihw.shape[0]), int(w_oihw.shape[1])
    k = 9 * cin
    kp = _round_up(k, 128)
    cp = _round_up(cout, 128)
    # (Cout,Cin,kh,kw) -> (kh,kw,Cin,Cout) -> (9*Cin, Cout), matches patch K order
    w_mat = jnp.transpose(w_oihw, (2, 3, 1, 0)).reshape(k, cout)
    w_mat = jnp.pad(w_mat, ((0, kp - k), (0, cp - cout))).astype(jnp.bfloat16)
    b_mat = jnp.pad(b.reshape(1, cout), ((0, 0), (0, cp - cout))).astype(jnp.float32)
    return {"w": w_mat, "b": b_mat}, {"cout": cout}


def _prep_linear(w_torch, b, tk_max=2048):
    n, k = int(w_torch.shape[0]), int(w_torch.shape[1])
    k128 = _round_up(k, 128)
    g = -(-k128 // tk_max)                     # number of K tiles
    tk = _round_up(-(-k128 // g), 128)         # adaptive tile, multiple of 128
    kp = tk * g
    npad = _round_up(n, 128)
    w = jnp.pad(jnp.transpose(w_torch),
                ((0, kp - k), (0, npad - n))).astype(jnp.bfloat16)
    b_mat = jnp.pad(b.reshape(1, n), ((0, 0), (0, npad - n))).astype(jnp.float32)
    return {"w": w, "b": b_mat}, {"tk": tk, "k": k, "n": n}


def _prep_params(raw):
    params, meta = {}, {}
    for name in ("c1", "c2", "c3"):
        params[name], meta[name] = _prep_conv(raw[name + "_w"], raw[name + "_b"])
    for name, rk in (("l1c1", "linear1_c1"), ("l2c1", "linear2_c1"),
                     ("l1c2", "linear1_c2"), ("l2c2", "linear2_c2"),
                     ("l1", "linear1"), ("l2", "linear2")):
        params[name], meta[name] = _prep_linear(raw[rk + "_w"], raw[rk + "_b"])
    for name in ("decide1", "decide2"):
        params[name] = {"w": jnp.transpose(raw[name + "_w"]).astype(jnp.float32),
                        "b": raw[name + "_b"].astype(jnp.float32)}
    return params, meta


# --------------------------------------------------------------------------
# Jitted device-side stages (host only sees the routing argmaxes)
# --------------------------------------------------------------------------

def _flatten_nchw(x_nhwc):
    # Matches torch's .view(-1, C*H*W) on an NCHW tensor.
    n = x_nhwc.shape[0]
    return jnp.transpose(x_nhwc, (0, 3, 1, 2)).reshape(n, -1)


def _stage1_fn(params, x_nchw, *, meta):
    x = jnp.transpose(x_nchw, (0, 2, 3, 1)).astype(jnp.float32)      # NHWC
    h1 = conv_relu_pool(x, params["c1"]["w"], params["c1"]["b"], **meta["c1"])
    f1 = _flatten_nchw(h1)                                           # (N, 8450)
    d1 = f1 @ params["decide1"]["w"] + params["decide1"]["b"]        # nout=2: plain XLA
    return h1, f1, jnp.argmax(d1, axis=1)


def _stage2_fn(params, h1_sel, *, meta):
    h2 = conv_relu_pool(h1_sel, params["c2"]["w"], params["c2"]["b"], **meta["c2"])
    f2 = _flatten_nchw(h2)                                           # (n2, 1250)
    d2 = f2 @ params["decide2"]["w"] + params["decide2"]["b"]
    return h2, f2, jnp.argmax(d2, axis=1)


def _stage3_fn(params, h2_sel, *, meta):
    h3 = conv_relu_pool(h2_sel, params["c3"]["w"], params["c3"]["b"], **meta["c3"])
    f3 = h3.reshape(h3.shape[0], -1)               # (n3, 50); H=W=1 so NHWC==NCHW
    y = linear(f3, params["l1"]["w"], params["l1"]["b"], relu=True, **meta["l1"])
    return linear(y, params["l2"]["w"], params["l2"]["b"], **meta["l2"])


def _exit_fn(params, f, *, l1, l2, meta):
    y = linear(f, params[l1]["w"], params[l1]["b"], **meta[l1])
    return linear(y, params[l2]["w"], params[l2]["b"], **meta[l2])


class ThreeLayerCNNPallas:
    def __init__(self, key):
        raw = _init_raw_params(key)
        self.params, meta = _prep_params(raw)
        self.meta = meta
        self._stage1 = jax.jit(functools.partial(_stage1_fn, meta=meta))
        self._stage2 = jax.jit(functools.partial(_stage2_fn, meta=meta))
        self._stage3 = jax.jit(functools.partial(_stage3_fn, meta=meta))
        self._exit1 = jax.jit(functools.partial(_exit_fn, l1="l1c1", l2="l2c1", meta=meta))
        self._exit2 = jax.jit(functools.partial(_exit_fn, l1="l1c2", l2="l2c2", meta=meta))
        self._logsm = jax.jit(lambda z: jax.nn.log_softmax(z, axis=-1))

    def __call__(self, x_nchw):
        params = self.params

        # ----- layer 1 (+ decide1 logits, fused into one jitted segment) -----
        l1_start = time.perf_counter()
        h1, f1, d1 = self._stage1(params, x_nchw)
        decisions1 = np.asarray(jax.device_get(d1))      # sync point
        l1_end = time.perf_counter()

        # ----- decision 1 routing (host-side, like original .numpy() calls) -----
        dl1_start = time.perf_counter()
        c1_output_idx = np.nonzero(decisions1 == 0)[0].tolist()
        c1_continue_idx = np.nonzero(decisions1 == 1)[0].tolist()
        if c1_output_idx:
            out_1 = self._exit1(params, f1[jnp.asarray(c1_output_idx)])
            out_1 = jax.block_until_ready(out_1)
        else:
            out_1 = jnp.zeros((0, 10), jnp.float32)
        dl1_end = time.perf_counter()

        # ----- layer 2 -----
        l2_start = time.perf_counter()
        out_2 = jnp.zeros((0, 10), jnp.float32)
        out_3 = jnp.zeros((0, 10), jnp.float32)
        real_c2_output, real_c2_continue = [], []
        if c1_continue_idx:
            h2, f2, d2 = self._stage2(params, h1[jnp.asarray(c1_continue_idx)])
            decisions2 = np.asarray(jax.device_get(d2))  # sync point
            l2_end = time.perf_counter()

            # ----- decision 2 -----
            dl2_start = time.perf_counter()
            c2_output_idx = np.nonzero(decisions2 == 0)[0].tolist()
            c2_continue_idx = np.nonzero(decisions2 == 1)[0].tolist()
            real_c2_output = [c1_continue_idx[i] for i in c2_output_idx]
            real_c2_continue = [c1_continue_idx[i] for i in c2_continue_idx]
            if c2_output_idx:
                out_2 = self._exit2(params, f2[jnp.asarray(c2_output_idx)])
                out_2 = jax.block_until_ready(out_2)
            dl2_end = time.perf_counter()

            # ----- layer 3 -----
            l3_start = time.perf_counter()
            if c2_continue_idx:
                out_3 = self._stage3(params, h2[jnp.asarray(c2_continue_idx)])
                out_3 = jax.block_until_ready(out_3)
        else:
            l2_end = time.perf_counter()
            dl2_start = dl2_end = time.perf_counter()
            l3_start = time.perf_counter()

        # ----- gather outputs -----
        order = c1_output_idx + real_c2_output + real_c2_continue
        holder = [t for t in (out_1, out_2, out_3) if t.shape[0] > 0]
        if holder:
            result = self._logsm(jnp.concatenate(holder, axis=0))
        else:   # only possible for an empty batch / pathological routing
            result = jnp.zeros((0, 10), jnp.float32)
        result = jax.block_until_ready(result)
        l3_end = time.perf_counter()

        timings = (l1_end - l1_start, dl1_end - dl1_start, l2_end - l2_start,
                   dl2_end - dl2_start, l3_end - l3_start)
        return (result, order,
                (c1_output_idx, real_c2_output, real_c2_continue), timings)


# --------------------------------------------------------------------------

if __name__ == "__main__":
    key = jax.random.PRNGKey(0)
    pkey, xkey = jax.random.split(key)
    model = ThreeLayerCNNPallas(pkey)

    batch = 2
    # NCHW input like torch; Linear(50*13*13) implies 28x28 single-channel images.
    x = jax.random.normal(xkey, (batch, 1, 28, 28), jnp.float32)

    logp, order, groups, timings = model(x)
    logp = jax.block_until_ready(logp)

    assert logp.shape == (batch, 10), logp.shape
    assert sorted(order) == list(range(batch)), (order, groups)
    # log-softmax rows must exponentiate-and-sum to ~1
    assert np.allclose(np.exp(np.asarray(logp)).sum(axis=1), 1.0, atol=1e-3)

    print("KERNEL_OK")
</pallas_src>

<mosaic_0001>
module attributes {stable_mosaic.version = 11 : i64} {
  func.func @_conv_relu_pool_kernel(%arg0: i32, %arg1: memref<4x128x128xbf16, #tpu.memory_space<vmem>>, %arg2: memref<128x128xbf16, #tpu.memory_space<vmem>>, %arg3: memref<1x128xf32, #tpu.memory_space<vmem>>, %arg4: memref<128x128xf32, #tpu.memory_space<vmem>>) attributes {dimension_semantics = [#tpu.dimension_semantics<parallel>], iteration_bounds = array<i64: 3>, scalar_prefetch = 0 : i64, scratch_operands = 0 : i64, tpu.core_type = #tpu.core_type<tc>, window_params = [{transform_indices = @transform_0, window_bounds = array<i64: 4, 128, 128>}, {pipeline_mode = #tpu.pipeline_mode<synchronous>, transform_indices = @transform_1, window_bounds = array<i64: 128, 128>}, {pipeline_mode = #tpu.pipeline_mode<synchronous>, transform_indices = @transform_2, window_bounds = array<i64: 1, 128>}, {transform_indices = @transform_3, window_bounds = array<i64: 128, 128>}]} {
    %c0 = arith.constant 0 : index
    %c0_0 = arith.constant 0 : index
    %0 = vector.load %arg2[%c0, %c0_0] : memref<128x128xbf16, #tpu.memory_space<vmem>>, vector<128x128xbf16>
    %c0_1 = arith.constant 0 : index
    %c0_2 = arith.constant 0 : index
    %c0_3 = arith.constant 0 : index
    %1 = vector.load %arg1[%c0_1, %c0_2, %c0_3] : memref<4x128x128xbf16, #tpu.memory_space<vmem>>, vector<1x128x128xbf16>
    %2 = vector.shape_cast %1 : vector<1x128x128xbf16> to vector<128x128xbf16>
    %cst = arith.constant dense<0.000000e+00> : vector<128x128xf32>
    %3 = tpu.matmul %2, %0, %cst {dimension_numbers = #tpu.dot_dimension_numbers<[1], [0], [0], [1], [0, 0, 1, 1], [], []>} : vector<128x128xbf16>, vector<128x128xbf16>, vector<128x128xf32> -> vector<128x128xf32>
    %c1 = arith.constant 1 : index
    %c0_4 = arith.constant 0 : index
    %c0_5 = arith.constant 0 : index
    %4 = vector.load %arg1[%c1, %c0_4, %c0_5] : memref<4x128x128xbf16, #tpu.memory_space<vmem>>, vector<1x128x128xbf16>
    %5 = vector.shape_cast %4 : vector<1x128x128xbf16> to vector<128x128xbf16>
    %cst_6 = arith.constant dense<0.000000e+00> : vector<128x128xf32>
    %6 = tpu.matmul %5, %0, %cst_6 {dimension_numbers = #tpu.dot_dimension_numbers<[1], [0], [0], [1], [0, 0, 1, 1], [], []>} : vector<128x128xbf16>, vector<128x128xbf16>, vector<128x128xf32> -> vector<128x128xf32>
    %7 = arith.maximumf %3, %6 : vector<128x128xf32>
    %c2 = arith.constant 2 : index
    %c0_7 = arith.constant 0 : index
    %c0_8 = arith.constant 0 : index
    %8 = vector.load %arg1[%c2, %c0_7, %c0_8] : memref<4x128x128xbf16, #tpu.memory_space<vmem>>, vector<1x128x128xbf16>
    %9 = vector.shape_cast %8 : vector<1x128x128xbf16> to vector<128x128xbf16>
    %cst_9 = arith.constant dense<0.000000e+00> : vector<128x128xf32>
    %10 = tpu.matmul %9, %0, %cst_9 {dimension_numbers = #tpu.dot_dimension_numbers<[1], [0], [0], [1], [0, 0, 1, 1], [], []>} : vector<128x128xbf16>, vector<128x128xbf16>, vector<128x128xf32> -> vector<128x128xf32>
    %11 = arith.maximumf %7, %10 : vector<128x128xf32>
    %c3 = arith.constant 3 : index
    %c0_10 = arith.constant 0 : index
    %c0_11 = arith.constant 0 : index
    %12 = vector.load %arg1[%c3, %c0_10, %c0_11] : memref<4x128x128xbf16, #tpu.memory_space<vmem>>, vector<1x128x128xbf16>
    %13 = vector.shape_cast %12 : vector<1x128x128xbf16> to vector<128x128xbf16>
    %cst_12 = arith.constant dense<0.000000e+00> : vector<128x128xf32>
    %14 = tpu.matmul %13, %0, %cst_12 {dimension_numbers = #tpu.dot_dimension_numbers<[1], [0], [0], [1], [0, 0, 1, 1], [], []>} : vector<128x128xbf16>, vector<128x128xbf16>, vector<128x128xf32> -> vector<128x128xf32>
    %15 = arith.maximumf %11, %14 : vector<128x128xf32>
    %c0_13 = arith.constant 0 : index
    %c0_14 = arith.constant 0 : index
    %16 = vector.load %arg3[%c0_13, %c0_14] : memref<1x128xf32, #tpu.memory_space<vmem>>, vector<1x128xf32>
    %17 = vector.broadcast %16 : vector<1x128xf32> to vector<128x128xf32>
    %18 = arith.addf %15, %17 : vector<128x128xf32>
    %cst_15 = arith.constant 0.000000e+00 : f32
    %19 = vector.broadcast %cst_15 : f32 to vector<128x128xf32>
    %20 = arith.maximumf %18, %19 : vector<128x128xf32>
    %c0_16 = arith.constant 0 : index
    %c0_17 = arith.constant 0 : index
    %21 = vector.load %arg4[%c0_16, %c0_17] : memref<128x128xf32, #tpu.memory_space<vmem>>, vector<128x128xf32>
    tpu.vector_store %arg4[%c0_16, %c0_17], %20 {strides = array<i32>} : memref<128x128xf32, #tpu.memory_space<vmem>>, vector<128x128xf32>,
    return
  }
  func.func @transform_0(%arg0: i32) -> (i32, i32, i32) {
    %c0_i32 = arith.constant 0 : i32
    %c0_i32_0 = arith.constant 0 : i32
    %c0_i32_1 = arith.constant 0 : i32
    return %c0_i32, %arg0, %c0_i32_0 : i32, i32, i32
  }
  func.func @transform_1(%arg0: i32) -> (i32, i32) {
    %c0_i32 = arith.constant 0 : i32
    %c0_i32_0 = arith.constant 0 : i32
    %c0_i32_1 = arith.constant 0 : i32
    return %c0_i32, %c0_i32_0 : i32, i32
  }
  func.func @transform_2(%arg0: i32) -> (i32, i32) {
    %c0_i32 = arith.constant 0 : i32
    %c0_i32_0 = arith.constant 0 : i32
    %c0_i32_1 = arith.constant 0 : i32
    return %c0_i32, %c0_i32_0 : i32, i32
  }
  func.func @transform_3(%arg0: i32) -> (i32, i32) {
    %c0_i32 = arith.constant 0 : i32
    %c0_i32_0 = arith.constant 0 : i32
    return %arg0, %c0_i32 : i32, i32
  }
}

</mosaic_0001>

<llo_original>
// kernel: _stage1_fn.1
$region0: #{_stage1_fn.1}
  #allocation0 [shape = 'u32[]', space=smem, size = 0x4, offset = 0x4, fixed_abs, tag = 'smem constant byte address 0x4 - core index']
  #allocation1 [shape = 'u32[72,128]{1,0:T(1,128)}', space=vmem, size = 0x9000, scoped, tag = 'internal scratch']
  %s0 = inlined_call_operand.vmem [shape: bf16[4,384,128], index: 0, kind: input, shape index: {}]
  %s1 = inlined_call_operand.vmem [shape: bf16[128,128], index: 1, kind: input, shape index: {}]
  %s2 = inlined_call_operand.vmem [shape: f32[1,128], index: 2, kind: input, shape index: {}]
  %s3 = inlined_call_operand.vmem [shape: f32[384,128], index: 3, kind: output, shape index: {}]
  %s4 = sld [smem:[#allocation0]]
  $region86: #{_stage1_fn.1} parent=0
    _
  %s6 = ssub.s32 1, %s4
  %s7 = scalar_select 0, %s6, %s4
  $region1: #{_stage1_fn.1} parent=0
    #allocation2 [shape = 'u8[262144]{0}', space=vmem, size = 0x40000, scoped, tag = 'input window, operand 0']
    loop: start=0, step=1, limit=5
    $region2: #{_stage1_fn.1} parent=1 // loop_pre_header
      _
    $region3: #{_stage1_fn.1} parent=1 // loop_header
      %s9 = sphi 0, %s13
      %p10 = scmp.ge.s32.totalorder %s9, 5
      %s19 = sphi 0, %s21
      %s22 = sphi 0, %s19
      %s23 = sphi 0, %s22
      %s39 = sphi 0, %s23
      %s43 = sphi 0, %s43
      %s45 = sphi 0, %s43
      %s46 = sphi 0, %s45
      %s60 = sphi 0, %s46
      %s64 = sphi 0, %s64
      %s66 = sphi 0, %s64
      %s67 = sphi 0, %s66
      %s81 = sphi 0, %s67
      %s87 = sphi 0, %s89
      %s90 = sphi 0, %s87
      %s91 = sphi 0, %s90
      %s107 = sphi 0, %s91
    $region4: #{_stage1_fn.1} parent=1 // loop_header_branch
      %12 = sbr.rel (%p10) target = $region8
    $region5: #{_stage1_fn.1} parent=1 // loop_body
      %s14 = ssub.s32 %s9, 1
      %s15 = ssub.s32 %s9, 2
      %s16 = sadd.s32 %s9, 1
      %s17 = ssub.s32 %s9, %s16
      %p18 = scmp.eq.s32.totalorder %s17, 0
      %s20 = sadd.s32 %s19, 1
      %s21 = scalar_select %p18, %s19, %s20
      %p24 = pneg %p18
      %p25 = scmp.eq.s32.totalorder %s9, 2
      %p26 = por %p24, %p25
      %p27 = scmp.ne.s32.totalorder %s19, %s22
      %p28 = scmp.eq.s32.totalorder %s9, 0
      %p29 = por %p27, %p28
      %p30 = scmp.ne.s32.totalorder %s19, %s22
      %p31 = scmp.eq.s32.totalorder %s14, 2
      %p32 = por %p30, %p31
      %p33 = scmp.ne.s32.totalorder %s22, %s23
      %p34 = scmp.eq.s32.totalorder %s14, 0
      %p35 = por %p33, %p34
      %p36 = scmp.ne.s32.totalorder %s22, %s23
      %p37 = scmp.eq.s32.totalorder %s15, 2
      %p38 = por %p36, %p37
      %p40 = scmp.ne.s32.totalorder %s23, %s39
      %p41 = scmp.eq.s32.totalorder %s15, 0
      %p42 = por %p40, %p41
      %s44 = sadd.s32 %s43, 1
      %p47 = scmp.eq.s32.totalorder %s9, 2
      %p48 = scmp.ne.s32.totalorder %s43, %s45
      %p49 = scmp.eq.s32.totalorder %s9, 0
      %p50 = por %p48, %p49
      %p51 = scmp.ne.s32.totalorder %s43, %s45
      %p52 = scmp.eq.s32.totalorder %s14, 2
      %p53 = por %p51, %p52
      %p54 = scmp.ne.s32.totalorder %s45, %s46
      %p55 = scmp.eq.s32.totalorder %s14, 0
      %p56 = por %p54, %p55
      %p57 = scmp.ne.s32.totalorder %s45, %s46
      %p58 = scmp.eq.s32.totalorder %s15, 2
      %p59 = por %p57, %p58
      %p61 = scmp.ne.s32.totalorder %s46, %s60
      %p62 = scmp.eq.s32.totalorder %s15, 0
      %p63 = por %p61, %p62
      %s65 = sadd.s32 %s64, 1
      %p68 = scmp.eq.s32.totalorder %s9, 2
      %p69 = scmp.ne.s32.totalorder %s64, %s66
      %p70 = scmp.eq.s32.totalorder %s9, 0
      %p71 = por %p69, %p70
      %p72 = scmp.ne.s32.totalorder %s64, %s66
      %p73 = scmp.eq.s32.totalorder %s14, 2
      %p74 = por %p72, %p73
      %p75 = scmp.ne.s32.totalorder %s66, %s67
      %p76 = scmp.eq.s32.totalorder %s14, 0
      %p77 = por %p75, %p76
      %p78 = scmp.ne.s32.totalorder %s66, %s67
      %p79 = scmp.eq.s32.totalorder %s15, 2
      %p80 = por %p78, %p79
      %p82 = scmp.ne.s32.totalorder %s67, %s81
      %p83 = scmp.eq.s32.totalorder %s15, 0
      %p84 = por %p82, %p83
      %s85 = ssub.s32 %s9, %s16
      %p86 = scmp.eq.s32.totalorder %s85, 0
      %s88 = sadd.s32 %s87, 1
      %s89 = scalar_select %p86, %s87, %s88
      %p92 = pneg %p86
      %p93 = scmp.eq.s32.totalorder %s9, 2
      %p94 = por %p92, %p93
      %p95 = scmp.ne.s32.totalorder %s87, %s90
      %p96 = scmp.eq.s32.totalorder %s9, 0
      %p97 = por %p95, %p96
      %p98 = scmp.ne.s32.totalorder %s87, %s90
      %p99 = scmp.eq.s32.totalorder %s14, 2
      %p100 = por %p98, %p99
      %p101 = scmp.ne.s32.totalorder %s90, %s91
      %p102 = scmp.eq.s32.totalorder %s14, 0
      %p103 = por %p101, %p102
      %p104 = scmp.ne.s32.totalorder %s90, %s91
      %p105 = scmp.eq.s32.totalorder %s15, 2
      %p106 = por %p104, %p105
      %p108 = scmp.ne.s32.totalorder %s91, %s107
      %p109 = scmp.eq.s32.totalorder %s15, 0
      %p110 = por %p108, %p109
      %p111 = scmp.le.s32.totalorder 1, %s9
      %p112 = scmp.lt.s32.totalorder %s9, 4
      %p113 = pnand %p111, %p112
      %p114 = pneg %p113
      // Predicated region
      $region9: #{_stage1_fn.1} parent=5 // pred_check
        _
      $region10: #{_stage1_fn.1} parent=5 // pred_check_branch
        %116 = sbr.rel (%p113) target = $region12
      $region11: #{_stage1_fn.1} parent=5 // pred_region
        %s117 = ssub.s32 %s9, 1
        // Predicated region
        $region13: #{_stage1_fn.1} parent=11 // pred_check
          %p118 = pneg %p56
        $region14: #{_stage1_fn.1} parent=11 // pred_check_branch
          %120 = sbr.rel (%p118) target = $region16
        $region15: #{_stage1_fn.1} parent=11 // pred_region
          _
        $region16: #{_stage1_fn.1} parent=11 // pred_fallthru
          _
        // Predicated region
        $region17: #{_stage1_fn.1} parent=11 // pred_check
          %p121 = pneg %p77
        $region18: #{_stage1_fn.1} parent=11 // pred_check_branch
          %123 = sbr.rel (%p121) target = $region20
        $region19: #{_stage1_fn.1} parent=11 // pred_region
          _
        $region20: #{_stage1_fn.1} parent=11 // pred_fallthru
          _
      $region12: #{_stage1_fn.1} parent=5 // pred_fallthru
        _
      %p124 = scmp.lt.s32.totalorder %s9, 3
      // Predicated region
      $region21: #{_stage1_fn.1} parent=5 // pred_check
        %p125 = pneg %p124
      $region22: #{_stage1_fn.1} parent=5 // pred_check_branch
        %127 = sbr.rel (%p125) target = $region24
      $region23: #{_stage1_fn.1} parent=5 // pred_region
        // Predicated region
        $region25: #{_stage1_fn.1} parent=23 // pred_check
          %p128 = pneg %p29
        $region26: #{_stage1_fn.1} parent=23 // pred_check_branch
          %130 = sbr.rel (%p128) target = $region28
        $region27: #{_stage1_fn.1} parent=23 // pred_region
          %s131 = sand.u32 %s19, 1
          %s132 = sand.u32 %s19, 1
          %s133 = smul.addr %s132, 256
          %s134 = scalar_lea.vmem [#allocation2], %s133
          %s135 = smul.u32 16, %s9
          %s136 = smul.addr %s135, 4
          %s137 = scalar_lea.vmem %s0, %s136
          // Predicated region
          $region29: #{_stage1_fn.1} parent=27 // pred_check
            _
          $region30: #{_stage1_fn.1} parent=27 // pred_check_branch
            %139 = sbr.rel (0) target = $region32
          $region31: #{_stage1_fn.1} parent=27 // pred_region
            // Predicated region
            $region33: #{_stage1_fn.1} parent=31 // pred_check
              _
            $region34: #{_stage1_fn.1} parent=31 // pred_check_branch
              %141 = sbr.rel target = $region36
            $region35: #{_stage1_fn.1} parent=31 // pred_region
              // Predicated region
              $region48: #{_stage1_fn.1} parent=35 // pred_check
                _
              $region49: #{_stage1_fn.1} parent=35 // pred_check_branch
                %283 = sbr.rel (0) target = $region51
              $region50: #{_stage1_fn.1} parent=35 // pred_region
                loop: start=0, step=1, limit=1
                $region52: #{_stage1_fn.1} parent=50 // loop_pre_header
                  _
                $region53: #{_stage1_fn.1} parent=50 // loop_header
                  %s285 = sphi 0, %s289
                  %p286 = scmp.ge.s32.totalorder %s285, 1
                  %s290 = sphi %s137, %s137
                  %s291 = sphi %s134, %s134
                $region54: #{_stage1_fn.1} parent=50 // loop_header_branch
                  %288 = sbr.rel (%p286) target = $region58
                $region55: #{_stage1_fn.1} parent=50 // loop_body
                  _
                $region56: #{_stage1_fn.1} parent=50 // loop_footer
                  %s289 = sadd.s32 1, %s285
                $region57: #{_stage1_fn.1} parent=50 // loop_footer_branch
                  %284 = sbr.rel target = $region53
                $region58: #{_stage1_fn.1} parent=50 // loop_exit
                  _
                %s293 = ssub.s32 16, 1
                loop: start=0, step=1, limit=1
                $region59: #{_stage1_fn.1} parent=50 // loop_pre_header
                  _
                $region60: #{_stage1_fn.1} parent=50 // loop_header
                  %s295 = sphi 0, %s299
                  %p296 = scmp.ge.s32.totalorder %s295, 1
                  %s300 = sphi %s137, %s137
                  %s301 = sphi %s134, %s134
                $region61: #{_stage1_fn.1} parent=50 // loop_header_branch
                  %298 = sbr.rel (%p296) target = $region65
                $region62: #{_stage1_fn.1} parent=50 // loop_body
                  %v302 = vld [vmem:[%s300] sm:%s293]
                  %303 = vst [vmem:[%s301] sm:%s293] %v302
                  %v304 = vld [vmem:[%s300 + $0x4] sm:%s293]
                  %305 = vst [vmem:[%s301 + $0x4] sm:%s293] %v304
                  %v306 = vld [vmem:[%s300 + $0x8] sm:%s293]
                  %307 = vst [vmem:[%s301 + $0x8] sm:%s293] %v306
                  %v308 = vld [vmem:[%s300 + $0xc] sm:%s293]
                  %309 = vst [vmem:[%s301 + $0xc] sm:%s293] %v308
                  %v310 = vld [vmem:[%s300 + $0x10] sm:%s293]
                  %311 = vst [vmem:[%s301 + $0x10] sm:%s293] %v310
                  %v312 = vld [vmem:[%s300 + $0x14] sm:%s293]
                  %313 = vst [vmem:[%s301 + $0x14] sm:%s293] %v312
                  %v314 = vld [vmem:[%s300 + $0x18] sm:%s293]
                  %315 = vst [vmem:[%s301 + $0x18] sm:%s293] %v314
                  %v316 = vld [vmem:[%s300 + $0x1c] sm:%s293]
                  %317 = vst [vmem:[%s301 + $0x1c] sm:%s293] %v316
                  %v318 = vld [vmem:[%s300 + $0x20] sm:%s293]
                  %319 = vst [vmem:[%s301 + $0x20] sm:%s293] %v318
                  %v320 = vld [vmem:[%s300 + $0x24] sm:%s293]
                  %321 = vst [vmem:[%s301 + $0x24] sm:%s293] %v320
                  %v322 = vld [vmem:[%s300 + $0x28] sm:%s293]
                  %323 = vst [vmem:[%s301 + $0x28] sm:%s293] %v322
                  %v324 = vld [vmem:[%s300 + $0x2c] sm:%s293]
                  %325 = vst [vmem:[%s301 + $0x2c] sm:%s293] %v324
                  %v326 = vld [vmem:[%s300 + $0x30] sm:%s293]
                  %327 = vst [vmem:[%s301 + $0x30] sm:%s293] %v326
                  %v328 = vld [vmem:[%s300 + $0x34] sm:%s293]
                  %329 = vst [vmem:[%s301 + $0x34] sm:%s293] %v328
                  %v330 = vld [vmem:[%s300 + $0x38] sm:%s293]
                  %331 = vst [vmem:[%s301 + $0x38] sm:%s293] %v330
                  %v332 = vld [vmem:[%s300 + $0x3c] sm:%s293]
                  %333 = vst [vmem:[%s301 + $0x3c] sm:%s293] %v332
                  %v334 = vld [vmem:[%s300 + $0xc0] sm:%s293]
                  %335 = vst [vmem:[%s301 + $0x40] sm:%s293] %v334
                  %v336 = vld [vmem:[%s300 + $0xc4] sm:%s293]
                  %337 = vst [vmem:[%s301 + $0x44] sm:%s293] %v336
                  %v338 = vld [vmem:[%s300 + $0xc8] sm:%s293]
                  %339 = vst [vmem:[%s301 + $0x48] sm:%s293] %v338
                  %v340 = vld [vmem:[%s300 + $0xcc] sm:%s293]
                  %341 = vst [vmem:[%s301 + $0x4c] sm:%s293] %v340
                  %v342 = vld [vmem:[%s300 + $0xd0] sm:%s293]
                  %343 = vst [vmem:[%s301 + $0x50] sm:%s293] %v342
                  %v344 = vld [vmem:[%s300 + $0xd4] sm:%s293]
                  %345 = vst [vmem:[%s301 + $0x54] sm:%s293] %v344
                  %v346 = vld [vmem:[%s300 + $0xd8] sm:%s293]
                  %347 = vst [vmem:[%s301 + $0x58] sm:%s293] %v346
                  %v348 = vld [vmem:[%s300 + $0xdc] sm:%s293]
                  %349 = vst [vmem:[%s301 + $0x5c] sm:%s293] %v348
                  %v350 = vld [vmem:[%s300 + $0xe0] sm:%s293]
                  %351 = vst [vmem:[%s301 + $0x60] sm:%s293] %v350
                  %v352 = vld [vmem:[%s300 + $0xe4] sm:%s293]
                  %353 = vst [vmem:[%s301 + $0x64] sm:%s293] %v352
                  %v354 = vld [vmem:[%s300 + $0xe8] sm:%s293]
                  %355 = vst [vmem:[%s301 + $0x68] sm:%s293] %v354
                  %v356 = vld [vmem:[%s300 + $0xec] sm:%s293]
                  %357 = vst [vmem:[%s301 + $0x6c] sm:%s293] %v356
                  %v358 = vld [vmem:[%s300 + $0xf0] sm:%s293]
                  %359 = vst [vmem:[%s301 + $0x70] sm:%s293] %v358
                  %v360 = vld [vmem:[%s300 + $0xf4] sm:%s293]
                  %361 = vst [vmem:[%s301 + $0x74] sm:%s293] %v360
                  %v362 = vld [vmem:[%s300 + $0xf8] sm:%s293]
                  %363 = vst [vmem:[%s301 + $0x78] sm:%s293] %v362
                  %v364 = vld [vmem:[%s300 + $0xfc] sm:%s293]
                  %365 = vst [vmem:[%s301 + $0x7c] sm:%s293] %v364
                  %v366 = vld [vmem:[%s300 + $0x180] sm:%s293]
                  %367 = vst [vmem:[%s301 + $0x80] sm:%s293] %v366
                  %v368 = vld [vmem:[%s300 + $0x184] sm:%s293]
                  %369 = vst [vmem:[%s301 + $0x84] sm:%s293] %v368
                  %v370 = vld [vmem:[%s300 + $0x188] sm:%s293]
                  %371 = vst [vmem:[%s301 + $0x88] sm:%s293] %v370
                  %v372 = vld [vmem:[%s300 + $0x18c] sm:%s293]
                  %373 = vst [vmem:[%s301 + $0x8c] sm:%s293] %v372
                  %v374 = vld [vmem:[%s300 + $0x190] sm:%s293]
                  %375 = vst [vmem:[%s301 + $0x90] sm:%s293] %v374
                  %v376 = vld [vmem:[%s300 + $0x194] sm:%s293]
                  %377 = vst [vmem:[%s301 + $0x94] sm:%s293] %v376
                  %v378 = vld [vmem:[%s300 + $0x198] sm:%s293]
                  %379 = vst [vmem:[%s301 + $0x98] sm:%s293] %v378
                  %v380 = vld [vmem:[%s300 + $0x19c] sm:%s293]
                  %381 = vst [vmem:[%s301 + $0x9c] sm:%s293] %v380
                  %v382 = vld [vmem:[%s300 + $0x1a0] sm:%s293]
                  %383 = vst [vmem:[%s301 + $0xa0] sm:%s293] %v382
                  %v384 = vld [vmem:[%s300 + $0x1a4] sm:%s293]
                  %385 = vst [vmem:[%s301 + $0xa4] sm:%s293] %v384
                  %v386 = vld [vmem:[%s300 + $0x1a8] sm:%s293]
                  %387 = vst [vmem:[%s301 + $0xa8] sm:%s293] %v386
                  %v388 = vld [vmem:[%s300 + $0x1ac] sm:%s293]
                  %389 = vst [vmem:[%s301 + $0xac] sm:%s293] %v388
                  %v390 = vld [vmem:[%s300 + $0x1b0] sm:%s293]
                  %391 = vst [vmem:[%s301 + $0xb0] sm:%s293] %v390
                  %v392 = vld [vmem:[%s300 + $0x1b4] sm:%s293]
                  %393 = vst [vmem:[%s301 + $0xb4] sm:%s293] %v392
                  %v394 = vld [vmem:[%s300 + $0x1b8] sm:%s293]
                  %395 = vst [vmem:[%s301 + $0xb8] sm:%s293] %v394
                  %v396 = vld [vmem:[%s300 + $0x1bc] sm:%s293]
                  %397 = vst [vmem:[%s301 + $0xbc] sm:%s293] %v396
                  %v398 = vld [vmem:[%s300 + $0x240] sm:%s293]
                  %399 = vst [vmem:[%s301 + $0xc0] sm:%s293] %v398
                  %v400 = vld [vmem:[%s300 + $0x244] sm:%s293]
                  %401 = vst [vmem:[%s301 + $0xc4] sm:%s293] %v400
                  %v402 = vld [vmem:[%s300 + $0x248] sm:%s293]
                  %403 = vst [vmem:[%s301 + $0xc8] sm:%s293] %v402
                  %v404 = vld [vmem:[%s300 + $0x24c] sm:%s293]
                  %405 = vst [vmem:[%s301 + $0xcc] sm:%s293] %v404
                  %v406 = vld [vmem:[%s300 + $0x250] sm:%s293]
                  %407 = vst [vmem:[%s301 + $0xd0] sm:%s293] %v406
                  %v408 = vld [vmem:[%s300 + $0x254] sm:%s293]
                  %409 = vst [vmem:[%s301 + $0xd4] sm:%s293] %v408
                  %v410 = vld [vmem:[%s300 + $0x258] sm:%s293]
                  %411 = vst [vmem:[%s301 + $0xd8] sm:%s293] %v410
                  %v412 = vld [vmem:[%s300 + $0x25c] sm:%s293]
                  %413 = vst [vmem:[%s301 + $0xdc] sm:%s293] %v412
                  %v414 = vld [vmem:[%s300 + $0x260] sm:%s293]
                  %415 = vst [vmem:[%s301 + $0xe0] sm:%s293] %v414
                  %v416 = vld [vmem:[%s300 + $0x264] sm:%s293]
                  %417 = vst [vmem:[%s301 + $0xe4] sm:%s293] %v416
                  %v418 = vld [vmem:[%s300 + $0x268] sm:%s293]
                  %419 = vst [vmem:[%s301 + $0xe8] sm:%s293] %v418
                  %v420 = vld [vmem:[%s300 + $0x26c] sm:%s293]
                  %421 = vst [vmem:[%s301 + $0xec] sm:%s293] %v420
                  %v422 = vld [vmem:[%s300 + $0x270] sm:%s293]
                  %423 = vst [vmem:[%s301 + $0xf0] sm:%s293] %v422
                  %v424 = vld [vmem:[%s300 + $0x274] sm:%s293]
                  %425 = vst [vmem:[%s301 + $0xf4] sm:%s293] %v424
                  %v426 = vld [vmem:[%s300 + $0x278] sm:%s293]
                  %427 = vst [vmem:[%s301 + $0xf8] sm:%s293] %v426
                  %v428 = vld [vmem:[%s300 + $0x27c] sm:%s293]
                  %429 = vst [vmem:[%s301 + $0xfc] sm:%s293] %v428
                $region63: #{_stage1_fn.1} parent=50 // loop_footer
                  %s299 = sadd.s32 1, %s295
                $region64: #{_stage1_fn.1} parent=50 // loop_footer_branch
                  %294 = sbr.rel target = $region60
                $region65: #{_stage1_fn.1} parent=50 // loop_exit
                  _
              $region51: #{_stage1_fn.1} parent=35 // pred_fallthru
                _
            $region36: #{_stage1_fn.1} parent=31 // pred_fallthru
              _
            // Predicated region
            $region37: #{_stage1_fn.1} parent=31 // pred_check
              _
            $region38: #{_stage1_fn.1} parent=31 // pred_check_branch
              %143 = sbr.rel (0) target = $region40
            $region39: #{_stage1_fn.1} parent=31 // pred_region
              %s145 = ssub.s32 16, 1
              loop: start=0, step=1, limit=1
              $region41: #{_stage1_fn.1} parent=39 // loop_pre_header
                _
              $region42: #{_stage1_fn.1} parent=39 // loop_header
                %s147 = sphi 0, %s151
                %p148 = scmp.ge.s32.totalorder %s147, 1
                %s152 = sphi %s137, %s137
                %s153 = sphi %s134, %s134
              $region43: #{_stage1_fn.1} parent=39 // loop_header_branch
                %150 = sbr.rel (%p148) target = $region47
              $region44: #{_stage1_fn.1} parent=39 // loop_body
                %v154 = vld [vmem:[%s152] sm:%s145]
                %155 = vst [vmem:[%s153] sm:%s145] %v154
                %v156 = vld [vmem:[%s152 + $0x4] sm:%s145]
                %157 = vst [vmem:[%s153 + $0x4] sm:%s145] %v156
                %v158 = vld [vmem:[%s152 + $0x8] sm:%s145]
                %159 = vst [vmem:[%s153 + $0x8] sm:%s145] %v158
                %v160 = vld [vmem:[%s152 + $0xc] sm:%s145]
                %161 = vst [vmem:[%s153 + $0xc] sm:%s145] %v160
                %v162 = vld [vmem:[%s152 + $0x10] sm:%s145]
                %163 = vst [vmem:[%s153 + $0x10] sm:%s145] %v162
                %v164 = vld [vmem:[%s152 + $0x14] sm:%s145]
                %165 = vst [vmem:[%s153 + $0x14] sm:%s145] %v164
                %v166 = vld [vmem:[%s152 + $0x18] sm:%s145]
                %167 = vst [vmem:[%s153 + $0x18] sm:%s145] %v166
                %v168 = vld [vmem:[%s152 + $0x1c] sm:%s145]
                %169 = vst [vmem:[%s153 + $0x1c] sm:%s145] %v168
                %v170 = vld [vmem:[%s152 + $0x20] sm:%s145]
                %171 = vst [vmem:[%s153 + $0x20] sm:%s145] %v170
                %v172 = vld [vmem:[%s152 + $0x24] sm:%s145]
                %173 = vst [vmem:[%s153 + $0x24] sm:%s145] %v172
                %v174 = vld [vmem:[%s152 + $0x28] sm:%s145]
                %175 = vst [vmem:[%s153 + $0x28] sm:%s145] %v174
                %v176 = vld [vmem:[%s152 + $0x2c] sm:%s145]
                %177 = vst [vmem:[%s153 + $0x2c] sm:%s145] %v176
                %v178 = vld [vmem:[%s152 + $0x30] sm:%s145]
                %179 = vst [vmem:[%s153 + $0x30] sm:%s145] %v178
                %v180 = vld [vmem:[%s152 + $0x34] sm:%s145]
                %181 = vst [vmem:[%s153 + $0x34] sm:%s145] %v180
                %v182 = vld [vmem:[%s152 + $0x38] sm:%s145]
                %183 = vst [vmem:[%s153 + $0x38] sm:%s145] %v182
                %v184 = vld [vmem:[%s152 + $0x3c] sm:%s145]
                %185 = vst [vmem:[%s153 + $0x3c] sm:%s145] %v184
                %v186 = vld [vmem:[%s152 + $0xc0] sm:%s145]
                %187 = vst [vmem:[%s153 + $0x40] sm:%s145] %v186
                %v188 = vld [vmem:[%s152 + $0xc4] sm:%s145]
                %189 = vst [vmem:[%s153 + $0x44] sm:%s145] %v188
                %v190 = vld [vmem:[%s152 + $0xc8] sm:%s145]
                %191 = vst [vmem:[%s153 + $0x48] sm:%s145] %v190
                %v192 = vld [vmem:[%s152 + $0xcc] sm:%s145]
                %193 = vst [vmem:[%s153 + $0x4c] sm:%s145] %v192
                %v194 = vld [vmem:[%s152 + $0xd0] sm:%s145]
                %195 = vst [vmem:[%s153 + $0x50] sm:%s145] %v194
                %v196 = vld [vmem:[%s152 + $0xd4] sm:%s145]
                %197 = vst [vmem:[%s153 + $0x54] sm:%s145] %v196
                %v198 = vld [vmem:[%s152 + $0xd8] sm:%s145]
                %199 = vst [vmem:[%s153 + $0x58] sm:%s145] %v198
                %v200 = vld [vmem:[%s152 + $0xdc] sm:%s145]
                %201 = vst [vmem:[%s153 + $0x5c] sm:%s145] %v200
                %v202 = vld [vmem:[%s152 + $0xe0] sm:%s145]
                %203 = vst [vmem:[%s153 + $0x60] sm:%s145] %v202
                %v204 = vld [vmem:[%s152 + $0xe4] sm:%s145]
                %205 = vst [vmem:[%s153 + $0x64] sm:%s145] %v204
                %v206 = vld [vmem:[%s152 + $0xe8] sm:%s145]
                %207 = vst [vmem:[%s153 + $0x68] sm:%s145] %v206
                %v208 = vld [vmem:[%s152 + $0xec] sm:%s145]
                %209 = vst [vmem:[%s153 + $0x6c] sm:%s145] %v208
                %v210 = vld [vmem:[%s152 + $0xf0] sm:%s145]
                %211 = vst [vmem:[%s153 + $0x70] sm:%s145] %v210
                %v212 = vld [vmem:[%s152 + $0xf4] sm:%s145]
                %213 = vst [vmem:[%s153 + $0x74] sm:%s145] %v212
                %v214 = vld [vmem:[%s152 + $0xf8] sm:%s145]
                %215 = vst [vmem:[%s153 + $0x78] sm:%s145] %v214
                %v216 = vld [vmem:[%s152 + $0xfc] sm:%s145]
                %217 = vst [vmem:[%s153 + $0x7c] sm:%s145] %v216
                %v218 = vld [vmem:[%s152 + $0x180] sm:%s145]
                %219 = vst [vmem:[%s153 + $0x80] sm:%s145] %v218
                %v220 = vld [vmem:[%s152 + $0x184] sm:%s145]
                %221 = vst [vmem:[%s153 + $0x84] sm:%s145] %v220
                %v222 = vld [vmem:[%s152 + $0x188] sm:%s145]
                %223 = vst [vmem:[%s153 + $0x88] sm:%s145] %v222
                %v224 = vld [vmem:[%s152 + $0x18c] sm:%s145]
                %225 = vst [vmem:[%s153 + $0x8c] sm:%s145] %v224
                %v226 = vld [vmem:[%s152 + $0x190] sm:%s145]
                %227 = vst [vmem:[%s153 + $0x90] sm:%s145] %v226
                %v228 = vld [vmem:[%s152 + $0x194] sm:%s145]
                %229 = vst [vmem:[%s153 + $0x94] sm:%s145] %v228
                %v230 = vld [vmem:[%s152 + $0x198] sm:%s145]
                %231 = vst [vmem:[%s153 + $0x98] sm:%s145] %v230
                %v232 = vld [vmem:[%s152 + $0x19c] sm:%s145]
                %233 = vst [vmem:[%s153 + $0x9c] sm:%s145] %v232
                %v234 = vld [vmem:[%s152 + $0x1a0] sm:%s145]
                %235 = vst [vmem:[%s153 + $0xa0] sm:%s145] %v234
                %v236 = vld [vmem:[%s152 + $0x1a4] sm:%s145]
                %237 = vst [vmem:[%s153 + $0xa4] sm:%s145] %v236
                %v238 = vld [vmem:[%s152 + $0x1a8] sm:%s145]
                %239 = vst [vmem:[%s153 + $0xa8] sm:%s145] %v238
                %v240 = vld [vmem:[%s152 + $0x1ac] sm:%s145]
                %241 = vst [vmem:[%s153 + $0xac] sm:%s145] %v240
                %v242 = vld [vmem:[%s152 + $0x1b0] sm:%s145]
                %243 = vst [vmem:[%s153 + $0xb0] sm:%s145] %v242
                %v244 = vld [vmem:[%s152 + $0x1b4] sm:%s145]
                %245 = vst [vmem:[%s153 + $0xb4] sm:%s145] %v244
                %v246 = vld [vmem:[%s152 + $0x1b8] sm:%s145]
                %247 = vst [vmem:[%s153 + $0xb8] sm:%s145] %v246
                %v248 = vld [vmem:[%s152 + $0x1bc] sm:%s145]
                %249 = vst [vmem:[%s153 + $0xbc] sm:%s145] %v248
                %v250 = vld [vmem:[%s152 + $0x240] sm:%s145]
                %251 = vst [vmem:[%s153 + $0xc0] sm:%s145] %v250
                %v252 = vld [vmem:[%s152 + $0x244] sm:%s145]
                %253 = vst [vmem:[%s153 + $0xc4] sm:%s145] %v252
                %v254 = vld [vmem:[%s152 + $0x248] sm:%s145]
                %255 = vst [vmem:[%s153 + $0xc8] sm:%s145] %v254
                %v256 = vld [vmem:[%s152 + $0x24c] sm:%s145]
                %257 = vst [vmem:[%s153 + $0xcc] sm:%s145] %v256
                %v258 = vld [vmem:[%s152 + $0x250] sm:%s145]
                %259 = vst [vmem:[%s153 + $0xd0] sm:%s145] %v258
                %v260 = vld [vmem:[%s152 + $0x254] sm:%s145]
                %261 = vst [vmem:[%s153 + $0xd4] sm:%s145] %v260
                %v262 = vld [vmem:[%s152 + $0x258] sm:%s145]
                %263 = vst [vmem:[%s153 + $0xd8] sm:%s145] %v262
                %v264 = vld [vmem:[%s152 + $0x25c] sm:%s145]
                %265 = vst [vmem:[%s153 + $0xdc] sm:%s145] %v264
                %v266 = vld [vmem:[%s152 + $0x260] sm:%s145]
                %267 = vst [vmem:[%s153 + $0xe0] sm:%s145] %v266
                %v268 = vld [vmem:[%s152 + $0x264] sm:%s145]
                %269 = vst [vmem:[%s153 + $0xe4] sm:%s145] %v268
                %v270 = vld [vmem:[%s152 + $0x268] sm:%s145]
                %271 = vst [vmem:[%s153 + $0xe8] sm:%s145] %v270
                %v272 = vld [vmem:[%s152 + $0x26c] sm:%s145]
                %273 = vst [vmem:[%s153 + $0xec] sm:%s145] %v272
                %v274 = vld [vmem:[%s152 + $0x270] sm:%s145]
                %275 = vst [vmem:[%s153 + $0xf0] sm:%s145] %v274
                %v276 = vld [vmem:[%s152 + $0x274] sm:%s145]
                %277 = vst [vmem:[%s153 + $0xf4] sm:%s145] %v276
                %v278 = vld [vmem:[%s152 + $0x278] sm:%s145]
                %279 = vst [vmem:[%s153 + $0xf8] sm:%s145] %v278
                %v280 = vld [vmem:[%s152 + $0x27c] sm:%s145]
                %281 = vst [vmem:[%s153 + $0xfc] sm:%s145] %v280
              $region45: #{_stage1_fn.1} parent=39 // loop_footer
                %s151 = sadd.s32 1, %s147
              $region46: #{_stage1_fn.1} parent=39 // loop_footer_branch
                %146 = sbr.rel target = $region42
              $region47: #{_stage1_fn.1} parent=39 // loop_exit
                _
            $region40: #{_stage1_fn.1} parent=31 // pred_fallthru
              _
          $region32: #{_stage1_fn.1} parent=27 // pred_fallthru
            _
          %430 = vnop
        $region28: #{_stage1_fn.1} parent=23 // pred_fallthru
          _
      $region24: #{_stage1_fn.1} parent=5 // pred_fallthru
        _
      %p431 = scmp.le.s32.totalorder 1, %s9
      %p432 = scmp.lt.s32.totalorder %s9, 4
      %p433 = pnand %p431, %p432
      %p434 = pneg %p433
      // Predicated region
      $region66: #{_stage1_fn.1} parent=5 // pred_check
        _
      $region67: #{_stage1_fn.1} parent=5 // pred_check_branch
        %436 = sbr.rel (%p433) target = $region69
      $region68: #{_stage1_fn.1} parent=5 // pred_region
        %s437 = ssub.s32 %s9, 1
        %s438 = sand.u32 %s22, 1
        %s439 = sand.u32 %s22, 1
        %s440 = smul.addr %s439, 256
        %s441 = scalar_lea.vmem [#allocation2], %s440
        // Predicated region
        $region70: #{_stage1_fn.1} parent=68 // pred_check
          %p442 = pneg %p35
        $region71: #{_stage1_fn.1} parent=68 // pred_check_branch
          %444 = sbr.rel (%p442) target = $region73
        $region72: #{_stage1_fn.1} parent=68 // pred_region
          _
        $region73: #{_stage1_fn.1} parent=68 // pred_fallthru
          _
        %s445 = sand.u32 %s22, 1
        %s446 = sand.u32 %s22, 1
        %s447 = smul.addr %s446, 256
        %s448 = scalar_lea.vmem [#allocation2], %s447
        %p449 = pneg %p35
        %p450 = pneg %p32
        %p451 = pneg %p56
        %p452 = pneg %p53
        %p453 = pneg %p77
        %p454 = pneg %p74
        %p455 = pneg %p103
        %p456 = pneg %p100
        %s457 = smul.u32 16, %s14
        %p458 = scmp.lt.s32.totalorder %s457, 47
        %s459 = scalar_select %p458, %s457, 47
        %s460 = smul.addr %s459, 8
        %s461 = scalar_lea.vmem %s3, %s460
        %s462 = smul.u32 16, %s14
        %s463 = smul.u32 16, %s14
        %p464 = scmp.lt.s32.totalorder %s463, 47
        %s465 = scalar_select %p464, %s463, 47
        %s466 = smul.addr %s465, 8
        %s467 = scalar_lea.vmem %s3, %s466
        %s468 = smul.u32 16, %s14
        %v469 = vld [vmem:[%s1] sm:$0xf]
        %v470 = vld [vmem:[%s1 + $0x4] sm:$0xf]
        %v471 = vld [vmem:[%s1 + $0x8] sm:$0xf]
        %v472 = vld [vmem:[%s1 + $0xc] sm:$0xf]
        %v473 = vld [vmem:[%s1 + $0x10] sm:$0xf]
        %v474 = vld [vmem:[%s1 + $0x14] sm:$0xf]
        %v475 = vld [vmem:[%s1 + $0x18] sm:$0xf]
        %v476 = vld [vmem:[%s1 + $0x1c] sm:$0xf]
        %v477 = vld [vmem:[%s1 + $0x20] sm:$0xf]
        %v478 = vld [vmem:[%s1 + $0x24] sm:$0xf]
        %v479 = vld [vmem:[%s1 + $0x28] sm:$0xf]
        %v480 = vld [vmem:[%s1 + $0x2c] sm:$0xf]
        %v481 = vld [vmem:[%s1 + $0x30] sm:$0xf]
        %v482 = vld [vmem:[%s1 + $0x34] sm:$0xf]
        %v483 = vld [vmem:[%s1 + $0x38] sm:$0xf]
        %v484 = vld [vmem:[%s1 + $0x3c] sm:$0xf]
        %v485 = vld [vmem:[%s441] sm:$0xf]
        %v486 = vld [vmem:[%s441 + $0x4] sm:$0xf]
        %v487 = vld [vmem:[%s441 + $0x8] sm:$0xf]
        %v488 = vld [vmem:[%s441 + $0xc] sm:$0xf]
        %v489 = vld [vmem:[%s441 + $0x10] sm:$0xf]
        %v490 = vld [vmem:[%s441 + $0x14] sm:$0xf]
        %v491 = vld [vmem:[%s441 + $0x18] sm:$0xf]
        %v492 = vld [vmem:[%s441 + $0x1c] sm:$0xf]
        %v493 = vld [vmem:[%s441 + $0x20] sm:$0xf]
        %v494 = vld [vmem:[%s441 + $0x24] sm:$0xf]
        %v495 = vld [vmem:[%s441 + $0x28] sm:$0xf]
        %v496 = vld [vmem:[%s441 + $0x2c] sm:$0xf]
        %v497 = vld [vmem:[%s441 + $0x30] sm:$0xf]
        %v498 = vld [vmem:[%s441 + $0x34] sm:$0xf]
        %v499 = vld [vmem:[%s441 + $0x38] sm:$0xf]
        %v500 = vld [vmem:[%s441 + $0x3c] sm:$0xf]
        %v517 = vunpack.c.l.b16 %v485
        %v518 = vunpack.c.l.b16 %v486
        %v519 = vunpack.c.l.b16 %v487
        %v520 = vunpack.c.l.b16 %v488
        %v521 = vunpack.c.l.b16 %v489
        %v522 = vunpack.c.l.b16 %v490
        %v523 = vunpack.c.l.b16 %v491
        %v524 = vunpack.c.l.b16 %v492
        %v525 = vunpack.c.l.b16 %v493
        %v526 = vunpack.c.l.b16 %v494
        %v527 = vunpack.c.l.b16 %v495
        %v528 = vunpack.c.l.b16 %v496
        %v529 = vunpack.c.l.b16 %v497
        %v530 = vunpack.c.l.b16 %v498
        %v531 = vunpack.c.l.b16 %v499
        %v532 = vunpack.c.l.b16 %v500
        %v533 = vpack.c.b16 %v518, %v517
        %v534 = vpack.c.b16 %v520, %v519
        %v535 = vpack.c.b16 %v522, %v521
        %v536 = vpack.c.b16 %v524, %v523
        %v537 = vpack.c.b16 %v526, %v525
        %v538 = vpack.c.b16 %v528, %v527
        %v539 = vpack.c.b16 %v530, %v529
        %v540 = vpack.c.b16 %v532, %v531
        %v565 = vunpack.c.l.b16 %v469
        %v566 = vunpack.c.l.b16 %v470
        %v567 = vunpack.c.l.b16 %v471
        %v568 = vunpack.c.l.b16 %v472
        %v569 = vunpack.c.l.b16 %v473
        %v570 = vunpack.c.l.b16 %v474
        %v571 = vunpack.c.l.b16 %v475
        %v572 = vunpack.c.l.b16 %v476
        %v573 = vunpack.c.l.b16 %v477
        %v574 = vunpack.c.l.b16 %v478
        %v575 = vunpack.c.l.b16 %v479
        %v576 = vunpack.c.l.b16 %v480
        %v577 = vunpack.c.l.b16 %v481
        %v578 = vunpack.c.l.b16 %v482
        %v579 = vunpack.c.l.b16 %v483
        %v580 = vunpack.c.l.b16 %v484
        %v581 = vpack.c.b16 %v566, %v565
        %v582 = vpack.c.b16 %v568, %v567
        %v583 = vpack.c.b16 %v570, %v569
        %v584 = vpack.c.b16 %v572, %v571
        %v585 = vpack.c.b16 %v574, %v573
        %v586 = vpack.c.b16 %v576, %v575
        %v587 = vpack.c.b16 %v578, %v577
        %v588 = vpack.c.b16 %v580, %v579
        %597 = vmatpush.bf16.msra.mxu0 %v588
        %598 = vmatpush.bf16.msra.mxu0 %v587
        %599 = vmatpush.bf16.msra.mxu0 %v586
        %600 = vmatpush.bf16.msra.mxu0 %v585
        %601 = vmatpush.bf16.msra.mxu0 %v584
        %602 = vmatpush.bf16.msra.mxu0 %v583
        %603 = vmatpush.bf16.msra.mxu0 %v582
        %604 = vmatpush.bf16.msra.mxu0 %v581
        %605 = vmatmul.bf16.gmra.mxu0 %v533
        %v606 = vpop.f32.mrf.mxu0
        %v607 = vadd.f32 0.0, %v606
        %v608 = vpop.f32.mrf.mxu0
        %v609 = vadd.f32 0.0, %v608
        %610 = vmatmul.bf16.gmra.mxu0 %v534
        %v611 = vpop.f32.mrf.mxu0
        %v612 = vadd.f32 0.0, %v611
        %v613 = vpop.f32.mrf.mxu0
        %v614 = vadd.f32 0.0, %v613
        %615 = vmatmul.bf16.gmra.mxu0 %v535
        %v616 = vpop.f32.mrf.mxu0
        %v617 = vadd.f32 0.0, %v616
        %v618 = vpop.f32.mrf.mxu0
        %v619 = vadd.f32 0.0, %v618
        %620 = vmatmul.bf16.gmra.mxu0 %v536
        %v621 = vpop.f32.mrf.mxu0
        %v622 = vadd.f32 0.0, %v621
        %v623 = vpop.f32.mrf.mxu0
        %v624 = vadd.f32 0.0, %v623
        %625 = vmatmul.bf16.gmra.mxu0 %v537
        %v626 = vpop.f32.mrf.mxu0
        %v627 = vadd.f32 0.0, %v626
        %v628 = vpop.f32.mrf.mxu0
        %v629 = vadd.f32 0.0, %v628
        %630 = vmatmul.bf16.gmra.mxu0 %v538
        %v631 = vpop.f32.mrf.mxu0
        %v632 = vadd.f32 0.0, %v631
        %v633 = vpop.f32.mrf.mxu0
        %v634 = vadd.f32 0.0, %v633
        %635 = vmatmul.bf16.gmra.mxu0 %v539
        %v636 = vpop.f32.mrf.mxu0
        %v637 = vadd.f32 0.0, %v636
        %v638 = vpop.f32.mrf.mxu0
        %v639 = vadd.f32 0.0, %v638
        %640 = vmatmul.bf16.gmra.mxu0 %v540
        %v641 = vpop.f32.mrf.mxu0
        %v642 = vadd.f32 0.0, %v641
        %v643 = vpop.f32.mrf.mxu0
        %v644 = vadd.f32 0.0, %v643
        %645 = vdwg.mxu0
        %s646 = scalar_lea.vmem %s441, 64 [#allocation2]
        %v647 = vld [vmem:[%s646] sm:$0xf]
        %v648 = vld [vmem:[%s646 + $0x4] sm:$0xf]
        %v649 = vld [vmem:[%s646 + $0x8] sm:$0xf]
        %v650 = vld [vmem:[%s646 + $0xc] sm:$0xf]
        %v651 = vld [vmem:[%s646 + $0x10] sm:$0xf]
        %v652 = vld [vmem:[%s646 + $0x14] sm:$0xf]
        %v653 = vld [vmem:[%s646 + $0x18] sm:$0xf]
        %v654 = vld [vmem:[%s646 + $0x1c] sm:$0xf]
        %v655 = vld [vmem:[%s646 + $0x20] sm:$0xf]
        %v656 = vld [vmem:[%s646 + $0x24] sm:$0xf]
        %v657 = vld [vmem:[%s646 + $0x28] sm:$0xf]
        %v658 = vld [vmem:[%s646 + $0x2c] sm:$0xf]
        %v659 = vld [vmem:[%s646 + $0x30] sm:$0xf]
        %v660 = vld [vmem:[%s646 + $0x34] sm:$0xf]
        %v661 = vld [vmem:[%s646 + $0x38] sm:$0xf]
        %v662 = vld [vmem:[%s646 + $0x3c] sm:$0xf]
        %v679 = vunpack.c.l.b16 %v647
        %v680 = vunpack.c.l.b16 %v648
        %v681 = vunpack.c.l.b16 %v649
        %v682 = vunpack.c.l.b16 %v650
        %v683 = vunpack.c.l.b16 %v651
        %v684 = vunpack.c.l.b16 %v652
        %v685 = vunpack.c.l.b16 %v653
        %v686 = vunpack.c.l.b16 %v654
        %v687 = vunpack.c.l.b16 %v655
        %v688 = vunpack.c.l.b16 %v656
        %v689 = vunpack.c.l.b16 %v657
        %v690 = vunpack.c.l.b16 %v658
        %v691 = vunpack.c.l.b16 %v659
        %v692 = vunpack.c.l.b16 %v660
        %v693 = vunpack.c.l.b16 %v661
        %v694 = vunpack.c.l.b16 %v662
        %v695 = vpack.c.b16 %v680, %v679
        %v696 = vpack.c.b16 %v682, %v681
        %v697 = vpack.c.b16 %v684, %v683
        %v698 = vpack.c.b16 %v686, %v685
        %v699 = vpack.c.b16 %v688, %v687
        %v700 = vpack.c.b16 %v690, %v689
        %v701 = vpack.c.b16 %v692, %v691
        %v702 = vpack.c.b16 %v694, %v693
        %711 = vmatpush.bf16.msra.mxu0 %v588
        %712 = vmatpush.bf16.msra.mxu0 %v587
        %713 = vmatpush.bf16.msra.mxu0 %v586
        %714 = vmatpush.bf16.msra.mxu0 %v585
        %715 = vmatpush.bf16.msra.mxu0 %v584
        %716 = vmatpush.bf16.msra.mxu0 %v583
        %717 = vmatpush.bf16.msra.mxu0 %v582
        %718 = vmatpush.bf16.msra.mxu0 %v581
        %719 = vmatmul.bf16.gmra.mxu0 %v695
        %v720 = vpop.f32.mrf.mxu0
        %v721 = vadd.f32 0.0, %v720
        %v722 = vpop.f32.mrf.mxu0
        %v723 = vadd.f32 0.0, %v722
        %724 = vmatmul.bf16.gmra.mxu0 %v696
        %v725 = vpop.f32.mrf.mxu0
        %v726 = vadd.f32 0.0, %v725
        %v727 = vpop.f32.mrf.mxu0
        %v728 = vadd.f32 0.0, %v727
        %729 = vmatmul.bf16.gmra.mxu0 %v697
        %v730 = vpop.f32.mrf.mxu0
        %v731 = vadd.f32 0.0, %v730
        %v732 = vpop.f32.mrf.mxu0
        %v733 = vadd.f32 0.0, %v732
        %734 = vmatmul.bf16.gmra.mxu0 %v698
        %v735 = vpop.f32.mrf.mxu0
        %v736 = vadd.f32 0.0, %v735
        %v737 = vpop.f32.mrf.mxu0
        %v738 = vadd.f32 0.0, %v737
        %739 = vmatmul.bf16.gmra.mxu0 %v699
        %v740 = vpop.f32.mrf.mxu0
        %v741 = vadd.f32 0.0, %v740
        %v742 = vpop.f32.mrf.mxu0
        %v743 = vadd.f32 0.0, %v742
        %744 = vmatmul.bf16.gmra.mxu0 %v700
        %v745 = vpop.f32.mrf.mxu0
        %v746 = vadd.f32 0.0, %v745
        %v747 = vpop.f32.mrf.mxu0
        %v748 = vadd.f32 0.0, %v747
        %749 = vmatmul.bf16.gmra.mxu0 %v701
        %v750 = vpop.f32.mrf.mxu0
        %v751 = vadd.f32 0.0, %v750
        %v752 = vpop.f32.mrf.mxu0
        %v753 = vadd.f32 0.0, %v752
        %754 = vmatmul.bf16.gmra.mxu0 %v702
        %v755 = vpop.f32.mrf.mxu0
        %v756 = vadd.f32 0.0, %v755
        %v757 = vpop.f32.mrf.mxu0
        %v758 = vadd.f32 0.0, %v757
        %759 = vdwg.mxu0
        %v760 = vmax.f32 %v607, %v721
        %v761 = vmax.f32 %v609, %v723
        %v762 = vmax.f32 %v612, %v726
        %v763 = vmax.f32 %v614, %v728
        %v764 = vmax.f32 %v617, %v731
        %v765 = vmax.f32 %v619, %v733
        %v766 = vmax.f32 %v622, %v736
        %v767 = vmax.f32 %v624, %v738
        %v768 = vmax.f32 %v627, %v741
        %v769 = vmax.f32 %v629, %v743
        %v770 = vmax.f32 %v632, %v746
        %v771 = vmax.f32 %v634, %v748
        %v772 = vmax.f32 %v637, %v751
        %v773 = vmax.f32 %v639, %v753
        %v774 = vmax.f32 %v642, %v756
        %v775 = vmax.f32 %v644, %v758
        %s776 = scalar_lea.vmem %s441, 128 [#allocation2]
        %v777 = vld [vmem:[%s776] sm:$0xf]
        %v778 = vld [vmem:[%s776 + $0x4] sm:$0xf]
        %v779 = vld [vmem:[%s776 + $0x8] sm:$0xf]
        %v780 = vld [vmem:[%s776 + $0xc] sm:$0xf]
        %v781 = vld [vmem:[%s776 + $0x10] sm:$0xf]
        %v782 = vld [vmem:[%s776 + $0x14] sm:$0xf]
        %v783 = vld [vmem:[%s776 + $0x18] sm:$0xf]
        %v784 = vld [vmem:[%s776 + $0x1c] sm:$0xf]
        %v785 = vld [vmem:[%s776 + $0x20] sm:$0xf]
        %v786 = vld [vmem:[%s776 + $0x24] sm:$0xf]
        %v787 = vld [vmem:[%s776 + $0x28] sm:$0xf]
        %v788 = vld [vmem:[%s776 + $0x2c] sm:$0xf]
        %v789 = vld [vmem:[%s776 + $0x30] sm:$0xf]
        %v790 = vld [vmem:[%s776 + $0x34] sm:$0xf]
        %v791 = vld [vmem:[%s776 + $0x38] sm:$0xf]
        %v792 = vld [vmem:[%s776 + $0x3c] sm:$0xf]
        %v809 = vunpack.c.l.b16 %v777
        %v810 = vunpack.c.l.b16 %v778
        %v811 = vunpack.c.l.b16 %v779
        %v812 = vunpack.c.l.b16 %v780
        %v813 = vunpack.c.l.b16 %v781
        %v814 = vunpack.c.l.b16 %v782
        %v815 = vunpack.c.l.b16 %v783
        %v816 = vunpack.c.l.b16 %v784
        %v817 = vunpack.c.l.b16 %v785
        %v818 = vunpack.c.l.b16 %v786
        %v819 = vunpack.c.l.b16 %v787
        %v820 = vunpack.c.l.b16 %v788
        %v821 = vunpack.c.l.b16 %v789
        %v822 = vunpack.c.l.b16 %v790
        %v823 = vunpack.c.l.b16 %v791
        %v824 = vunpack.c.l.b16 %v792
        %v825 = vpack.c.b16 %v810, %v809
        %v826 = vpack.c.b16 %v812, %v811
        %v827 = vpack.c.b16 %v814, %v813
        %v828 = vpack.c.b16 %v816, %v815
        %v829 = vpack.c.b16 %v818, %v817
        %v830 = vpack.c.b16 %v820, %v819
        %v831 = vpack.c.b16 %v822, %v821
        %v832 = vpack.c.b16 %v824, %v823
        %841 = vmatpush.bf16.msra.mxu0 %v588
        %842 = vmatpush.bf16.msra.mxu0 %v587
        %843 = vmatpush.bf16.msra.mxu0 %v586
        %844 = vmatpush.bf16.msra.mxu0 %v585
        %845 = vmatpush.bf16.msra.mxu0 %v584
        %846 = vmatpush.bf16.msra.mxu0 %v583
        %847 = vmatpush.bf16.msra.mxu0 %v582
        %848 = vmatpush.bf16.msra.mxu0 %v581
        %849 = vmatmul.bf16.gmra.mxu0 %v825
        %v850 = vpop.f32.mrf.mxu0
        %v851 = vadd.f32 0.0, %v850
        %v852 = vpop.f32.mrf.mxu0
        %v853 = vadd.f32 0.0, %v852
        %854 = vmatmul.bf16.gmra.mxu0 %v826
        %v855 = vpop.f32.mrf.mxu0
        %v856 = vadd.f32 0.0, %v855
        %v857 = vpop.f32.mrf.mxu0
        %v858 = vadd.f32 0.0, %v857
        %859 = vmatmul.bf16.gmra.mxu0 %v827
        %v860 = vpop.f32.mrf.mxu0
        %v861 = vadd.f32 0.0, %v860
        %v862 = vpop.f32.mrf.mxu0
        %v863 = vadd.f32 0.0, %v862
        %864 = vmatmul.bf16.gmra.mxu0 %v828
        %v865 = vpop.f32.mrf.mxu0
        %v866 = vadd.f32 0.0, %v865
        %v867 = vpop.f32.mrf.mxu0
        %v868 = vadd.f32 0.0, %v867
        %869 = vmatmul.bf16.gmra.mxu0 %v829
        %v870 = vpop.f32.mrf.mxu0
        %v871 = vadd.f32 0.0, %v870
        %v872 = vpop.f32.mrf.mxu0
        %v873 = vadd.f32 0.0, %v872
        %874 = vmatmul.bf16.gmra.mxu0 %v830
        %v875 = vpop.f32.mrf.mxu0
        %v876 = vadd.f32 0.0, %v875
        %v877 = vpop.f32.mrf.mxu0
        %v878 = vadd.f32 0.0, %v877
        %879 = vmatmul.bf16.gmra.mxu0 %v831
        %v880 = vpop.f32.mrf.mxu0
        %v881 = vadd.f32 0.0, %v880
        %v882 = vpop.f32.mrf.mxu0
        %v883 = vadd.f32 0.0, %v882
        %884 = vmatmul.bf16.gmra.mxu0 %v832
        %v885 = vpop.f32.mrf.mxu0
        %v886 = vadd.f32 0.0, %v885
        %v887 = vpop.f32.mrf.mxu0
        %v888 = vadd.f32 0.0, %v887
        %889 = vdwg.mxu0
        %v890 = vmax.f32 %v760, %v851
        %v891 = vmax.f32 %v761, %v853
        %v892 = vmax.f32 %v762, %v856
        %v893 = vmax.f32 %v763, %v858
        %v894 = vmax.f32 %v764, %v861
        %v895 = vmax.f32 %v765, %v863
        %v896 = vmax.f32 %v766, %v866
        %v897 = vmax.f32 %v767, %v868
        %v898 = vmax.f32 %v768, %v871
        %v899 = vmax.f32 %v769, %v873
        %v900 = vmax.f32 %v770, %v876
        %v901 = vmax.f32 %v771, %v878
        %v902 = vmax.f32 %v772, %v881
        %v903 = vmax.f32 %v773, %v883
        %v904 = vmax.f32 %v774, %v886
        %v905 = vmax.f32 %v775, %v888
        %s906 = scalar_lea.vmem %s441, 192 [#allocation2]
        %v907 = vld [vmem:[%s906] sm:$0xf]
        %v908 = vld [vmem:[%s906 + $0x4] sm:$0xf]
        %v909 = vld [vmem:[%s906 + $0x8] sm:$0xf]
        %v910 = vld [vmem:[%s906 + $0xc] sm:$0xf]
        %v911 = vld [vmem:[%s906 + $0x10] sm:$0xf]
        %v912 = vld [vmem:[%s906 + $0x14] sm:$0xf]
        %v913 = vld [vmem:[%s906 + $0x18] sm:$0xf]
        %v914 = vld [vmem:[%s906 + $0x1c] sm:$0xf]
        %v915 = vld [vmem:[%s906 + $0x20] sm:$0xf]
        %v916 = vld [vmem:[%s906 + $0x24] sm:$0xf]
        %v917 = vld [vmem:[%s906 + $0x28] sm:$0xf]
        %v918 = vld [vmem:[%s906 + $0x2c] sm:$0xf]
        %v919 = vld [vmem:[%s906 + $0x30] sm:$0xf]
        %v920 = vld [vmem:[%s906 + $0x34] sm:$0xf]
        %v921 = vld [vmem:[%s906 + $0x38] sm:$0xf]
        %v922 = vld [vmem:[%s906 + $0x3c] sm:$0xf]
        %v939 = vunpack.c.l.b16 %v907
        %v940 = vunpack.c.l.b16 %v908
        %v941 = vunpack.c.l.b16 %v909
        %v942 = vunpack.c.l.b16 %v910
        %v943 = vunpack.c.l.b16 %v911
        %v944 = vunpack.c.l.b16 %v912
        %v945 = vunpack.c.l.b16 %v913
        %v946 = vunpack.c.l.b16 %v914
        %v947 = vunpack.c.l.b16 %v915
        %v948 = vunpack.c.l.b16 %v916
        %v949 = vunpack.c.l.b16 %v917
        %v950 = vunpack.c.l.b16 %v918
        %v951 = vunpack.c.l.b16 %v919
        %v952 = vunpack.c.l.b16 %v920
        %v953 = vunpack.c.l.b16 %v921
        %v954 = vunpack.c.l.b16 %v922
        %v955 = vpack.c.b16 %v940, %v939
        %v956 = vpack.c.b16 %v942, %v941
        %v957 = vpack.c.b16 %v944, %v943
        %v958 = vpack.c.b16 %v946, %v945
        %v959 = vpack.c.b16 %v948, %v947
        %v960 = vpack.c.b16 %v950, %v949
        %v961 = vpack.c.b16 %v952, %v951
        %v962 = vpack.c.b16 %v954, %v953
        %971 = vmatpush.bf16.msra.mxu0 %v588
        %972 = vmatpush.bf16.msra.mxu0 %v587
        %973 = vmatpush.bf16.msra.mxu0 %v586
        %974 = vmatpush.bf16.msra.mxu0 %v585
        %975 = vmatpush.bf16.msra.mxu0 %v584
        %976 = vmatpush.bf16.msra.mxu0 %v583
        %977 = vmatpush.bf16.msra.mxu0 %v582
        %978 = vmatpush.bf16.msra.mxu0 %v581
        %979 = vmatmul.bf16.gmra.mxu0 %v955
        %v980 = vpop.f32.mrf.mxu0
        %v981 = vadd.f32 0.0, %v980
        %v982 = vpop.f32.mrf.mxu0
        %v983 = vadd.f32 0.0, %v982
        %984 = vmatmul.bf16.gmra.mxu0 %v956
        %v985 = vpop.f32.mrf.mxu0
        %v986 = vadd.f32 0.0, %v985
        %v987 = vpop.f32.mrf.mxu0
        %v988 = vadd.f32 0.0, %v987
        %989 = vmatmul.bf16.gmra.mxu0 %v957
        %v990 = vpop.f32.mrf.mxu0
        %v991 = vadd.f32 0.0, %v990
        %v992 = vpop.f32.mrf.mxu0
        %v993 = vadd.f32 0.0, %v992
        %994 = vmatmul.bf16.gmra.mxu0 %v958
        %v995 = vpop.f32.mrf.mxu0
        %v996 = vadd.f32 0.0, %v995
        %v997 = vpop.f32.mrf.mxu0
        %v998 = vadd.f32 0.0, %v997
        %999 = vmatmul.bf16.gmra.mxu0 %v959
        %v1000 = vpop.f32.mrf.mxu0
        %v1001 = vadd.f32 0.0, %v1000
        %v1002 = vpop.f32.mrf.mxu0
        %v1003 = vadd.f32 0.0, %v1002
        %1004 = vmatmul.bf16.gmra.mxu0 %v960
        %v1005 = vpop.f32.mrf.mxu0
        %v1006 = vadd.f32 0.0, %v1005
        %v1007 = vpop.f32.mrf.mxu0
        %v1008 = vadd.f32 0.0, %v1007
        %1009 = vmatmul.bf16.gmra.mxu0 %v961
        %v1010 = vpop.f32.mrf.mxu0
        %v1011 = vadd.f32 0.0, %v1010
        %v1012 = vpop.f32.mrf.mxu0
        %v1013 = vadd.f32 0.0, %v1012
        %1014 = vmatmul.bf16.gmra.mxu0 %v962
        %v1015 = vpop.f32.mrf.mxu0
        %v1016 = vadd.f32 0.0, %v1015
        %v1017 = vpop.f32.mrf.mxu0
        %v1018 = vadd.f32 0.0, %v1017
        %1019 = vdwg.mxu0
        %v1020 = vmax.f32 %v890, %v981
        %v1021 = vmax.f32 %v891, %v983
        %v1022 = vmax.f32 %v892, %v986
        %v1023 = vmax.f32 %v893, %v988
        %v1024 = vmax.f32 %v894, %v991
        %v1025 = vmax.f32 %v895, %v993
        %v1026 = vmax.f32 %v896, %v996
        %v1027 = vmax.f32 %v897, %v998
        %v1028 = vmax.f32 %v898, %v1001
        %v1029 = vmax.f32 %v899, %v1003
        %v1030 = vmax.f32 %v900, %v1006
        %v1031 = vmax.f32 %v901, %v1008
        %v1032 = vmax.f32 %v902, %v1011
        %v1033 = vmax.f32 %v903, %v1013
        %v1034 = vmax.f32 %v904, %v1016
        %v1035 = vmax.f32 %v905, %v1018
        %v1036 = vld [vmem:[%s2] sm:$0x1]
        %v1038 = vperm.slane %v1036, 0
        %v1040 = vadd.f32 %v1020, %v1038
        %v1041 = vadd.f32 %v1021, %v1038
        %v1042 = vadd.f32 %v1022, %v1038
        %v1043 = vadd.f32 %v1023, %v1038
        %v1044 = vadd.f32 %v1024, %v1038
        %v1045 = vadd.f32 %v1025, %v1038
        %v1046 = vadd.f32 %v1026, %v1038
        %v1047 = vadd.f32 %v1027, %v1038
        %v1048 = vadd.f32 %v1028, %v1038
        %v1049 = vadd.f32 %v1029, %v1038
        %v1050 = vadd.f32 %v1030, %v1038
        %v1051 = vadd.f32 %v1031, %v1038
        %v1052 = vadd.f32 %v1032, %v1038
        %v1053 = vadd.f32 %v1033, %v1038
        %v1054 = vadd.f32 %v1034, %v1038
        %v1055 = vadd.f32 %v1035, %v1038
        %v1056 = vmax.f32 %v1040, 0.0
        %v1057 = vmax.f32 %v1041, 0.0
        %v1058 = vmax.f32 %v1042, 0.0
        %v1059 = vmax.f32 %v1043, 0.0
        %v1060 = vmax.f32 %v1044, 0.0
        %v1061 = vmax.f32 %v1045, 0.0
        %v1062 = vmax.f32 %v1046, 0.0
        %v1063 = vmax.f32 %v1047, 0.0
        %v1064 = vmax.f32 %v1048, 0.0
        %v1065 = vmax.f32 %v1049, 0.0
        %v1066 = vmax.f32 %v1050, 0.0
        %v1067 = vmax.f32 %v1051, 0.0
        %v1068 = vmax.f32 %v1052, 0.0
        %v1069 = vmax.f32 %v1053, 0.0
        %v1070 = vmax.f32 %v1054, 0.0
        %v1071 = vmax.f32 %v1055, 0.0
        %1072 = vst [vmem:[%s467] sm:$0xff] %v1056
        %1073 = vst [vmem:[%s467 + $0x8] sm:$0xff] %v1057
        %1074 = vst [vmem:[%s467 + $0x10] sm:$0xff] %v1058
        %1075 = vst [vmem:[%s467 + $0x18] sm:$0xff] %v1059
        %1076 = vst [vmem:[%s467 + $0x20] sm:$0xff] %v1060
        %1077 = vst [vmem:[%s467 + $0x28] sm:$0xff] %v1061
        %1078 = vst [vmem:[%s467 + $0x30] sm:$0xff] %v1062
        %1079 = vst [vmem:[%s467 + $0x38] sm:$0xff] %v1063
        %1080 = vst [vmem:[%s467 + $0x40] sm:$0xff] %v1064
        %1081 = vst [vmem:[%s467 + $0x48] sm:$0xff] %v1065
        %1082 = vst [vmem:[%s467 + $0x50] sm:$0xff] %v1066
        %1083 = vst [vmem:[%s467 + $0x58] sm:$0xff] %v1067
        %1084 = vst [vmem:[%s467 + $0x60] sm:$0xff] %v1068
        %1085 = vst [vmem:[%s467 + $0x68] sm:$0xff] %v1069
        %1086 = vst [vmem:[%s467 + $0x70] sm:$0xff] %v1070
        %1087 = vst [vmem:[%s467 + $0x78] sm:$0xff] %v1071
        %s1088 = smul.u32 16, %s14
        %p1089 = scmp.lt.s32.totalorder %s1088, 47
        %s1090 = scalar_select %p1089, %s1088, 47
        %s1091 = smul.addr %s1090, 8
        %s1092 = scalar_lea.vmem %s3, %s1091
        // Predicated region
        $region74: #{_stage1_fn.1} parent=68 // pred_check
          %p1093 = pneg %p100
        $region75: #{_stage1_fn.1} parent=68 // pred_check_branch
          %1095 = sbr.rel (%p1093) target = $region77
        $region76: #{_stage1_fn.1} parent=68 // pred_region
          %s1096 = smul.u32 16, %s14
        $region77: #{_stage1_fn.1} parent=68 // pred_fallthru
          _
      $region69: #{_stage1_fn.1} parent=5 // pred_fallthru
        _
      %p1097 = scmp.le.s32.totalorder 2, %s9
      // Predicated region
      $region78: #{_stage1_fn.1} parent=5 // pred_check
        %p1098 = pneg %p1097
      $region79: #{_stage1_fn.1} parent=5 // pred_check_branch
        %1100 = sbr.rel (%p1098) target = $region81
      $region80: #{_stage1_fn.1} parent=5 // pred_region
        %s1101 = ssub.s32 %s9, 2
        // Predicated region
        $region82: #{_stage1_fn.1} parent=80 // pred_check
          %p1102 = pneg %p106
        $region83: #{_stage1_fn.1} parent=80 // pred_check_branch
          %1104 = sbr.rel (%p1102) target = $region85
        $region84: #{_stage1_fn.1} parent=80 // pred_region
          %s1105 = smul.u32 16, %s15
          %p1106 = scmp.lt.s32.totalorder %s1105, 47
          %s1107 = scalar_select %p1106, %s1105, 47
          %s1108 = smul.addr %s1107, 8
          %s1109 = scalar_lea.vmem %s3, %s1108
        $region85: #{_stage1_fn.1} parent=80 // pred_fallthru
          _
      $region81: #{_stage1_fn.1} parent=5 // pred_fallthru
        _
    $region6: #{_stage1_fn.1} parent=1 // loop_footer
      %s13 = sadd.s32 1, %s9
    $region7: #{_stage1_fn.1} parent=1 // loop_footer_branch
      %8 = sbr.rel target = $region3
    $region8: #{_stage1_fn.1} parent=1 // loop_exit
      _

</llo_original>
